<compile_context>
chip_gen: v5e
topology: v5e:2x2
jax: 0.10.0
libtpu: 0.0.40
codegen_flags: <defaults>
</compile_context>

<pallas_src>
import math
import functools

import jax
import jax.numpy as jnp
from jax.experimental import pallas as pl
from jax.experimental.pallas import tpu as pltpu


def _round_up(x, m):
    return ((x + m - 1) // m) * m


# ---------------------------------------------------------------------------
# Kernel 1: support = X @ W  (tiny-K matmul, computed once, tiled over rows)
# ---------------------------------------------------------------------------
def _support_kernel(x_ref, w_ref, s_ref):
    s = jnp.dot(x_ref[...], w_ref[...], preferred_element_type=jnp.float32)
    s_ref[...] = s.astype(s_ref.dtype)


# ---------------------------------------------------------------------------
# Kernel 2: out = A @ support + bias  (streaming, memory-bound matmul)
# grid = (row_tiles, k_tiles); reduction axis last; f32 accumulator scratch.
# ---------------------------------------------------------------------------
def _aggregate_kernel(adj_ref, s_ref, b_ref, o_ref, acc_ref):
    k = pl.program_id(1)

    @pl.when(k == 0)
    def _():
        acc_ref[...] = jnp.zeros_like(acc_ref)

    acc_ref[...] += jnp.dot(adj_ref[...], s_ref[...],
                            preferred_element_type=jnp.float32)

    @pl.when(k == pl.num_programs(1) - 1)
    def _():
        o_ref[...] = (acc_ref[...] + b_ref[...]).astype(o_ref.dtype)


@functools.partial(jax.jit, static_argnames=("compute_dtype", "tm", "tk"))
def graph_convolution(x, adj, weight, bias=None, *,
                      compute_dtype=jnp.bfloat16, tm=512, tk=512):
    """GraphConvolution.forward(input, adj) with dense adjacency.

    x:      (N, F_in)     float32
    adj:    (N, N)        float32 (dense; torch.spmm semantics == dense matmul)
    weight: (F_in, F_out) float32
    bias:   (F_out,) or None
    returns (N, F_out)    float32
    """
    N, f_in = x.shape
    f_out = weight.shape[1]
    itemsize = jnp.dtype(compute_dtype).itemsize

    # Lane-dense output: pad feature dim to a multiple of 128.
    f_out_p = _round_up(f_out, 128)
    # Reduction (adjacency-column / support-row) tile, multiple of 128.
    TK = min(tk, _round_up(N, 128))
    n_k = _round_up(N, TK)
    # Output-row tile, multiple of 8.
    TM = min(tm, _round_up(N, 8))
    n_m = _round_up(N, TM)

    # Pad + cast. Zero padding is exact: padded adj columns multiply padded
    # zero support rows; padded output rows/cols are sliced off at the end.
    x_p = jnp.zeros((n_k, f_in), compute_dtype).at[:N, :].set(
        x.astype(compute_dtype))
    w_p = jnp.zeros((f_in, f_out_p), compute_dtype).at[:, :f_out].set(
        weight.astype(compute_dtype))
    adj_p = jnp.zeros((n_m, n_k), compute_dtype).at[:N, :N].set(
        adj.astype(compute_dtype))
    if bias is None:
        b_p = jnp.zeros((1, f_out_p), jnp.float32)
    else:
        b_p = jnp.zeros((1, f_out_p), jnp.float32).at[0, :f_out].set(
            bias.astype(jnp.float32))

    # ---- support = X @ W : computed once, NOT per adjacency row-tile --------
    support = pl.pallas_call(
        _support_kernel,
        out_shape=jax.ShapeDtypeStruct((n_k, f_out_p), compute_dtype),
        grid=(n_k // TK,),
        in_specs=[
            pl.BlockSpec((TK, f_in), lambda i: (i, 0)),
            pl.BlockSpec((f_in, f_out_p), lambda i: (0, 0)),
        ],
        out_specs=pl.BlockSpec((TK, f_out_p), lambda i: (i, 0)),
        compiler_params=pltpu.CompilerParams(
            dimension_semantics=("parallel",)),
    )(x_p, w_p)

    # ---- out = A @ support + bias -------------------------------------------
    vmem_needed = (2 * TM * TK * itemsize          # adj tile, double-buffered
                   + 2 * TK * f_out_p * itemsize   # support tile, double-buffered
                   + 2 * TM * f_out_p * 4          # out tile, double-buffered
                   + 2 * f_out_p * 4               # bias
                   + TM * f_out_p * 4)             # f32 accumulator scratch
    vmem_limit = int(max(vmem_needed * 1.25, 8 * 1024 * 1024))

    cost = pl.CostEstimate(
        flops=2 * n_m * n_k * f_out_p,
        transcendentals=0,
        bytes_accessed=(n_m * n_k * itemsize + n_k * f_out_p * itemsize
                        + n_m * f_out_p * 4 + f_out_p * 4),
    )

    out_p = pl.pallas_call(
        _aggregate_kernel,
        out_shape=jax.ShapeDtypeStruct((n_m, f_out_p), jnp.float32),
        grid=(n_m // TM, n_k // TK),
        in_specs=[
            pl.BlockSpec((TM, TK), lambda i, k: (i, k)),
            pl.BlockSpec((TK, f_out_p), lambda i, k: (k, 0)),
            pl.BlockSpec((1, f_out_p), lambda i, k: (0, 0)),
        ],
        out_specs=pl.BlockSpec((TM, f_out_p), lambda i, k: (i, 0)),
        scratch_shapes=[pltpu.VMEM((TM, f_out_p), jnp.float32)],
        compiler_params=pltpu.CompilerParams(
            dimension_semantics=("parallel", "arbitrary"),
            vmem_limit_bytes=vmem_limit),
        cost_estimate=cost,
    )(adj_p, support, b_p)

    return out_p[:N, :f_out]


def init_gcn_params(key, in_features, out_features, bias=True):
    """Deterministic re-implementation of GraphConvolution.reset_parameters()."""
    stdv = 1.0 / math.sqrt(out_features)
    kw, kb = jax.random.split(key)
    weight = jax.random.uniform(
        kw, (in_features, out_features), jnp.float32, minval=-stdv, maxval=stdv)
    b = None
    if bias:
        b = jax.random.uniform(
            kb, (out_features,), jnp.float32, minval=-stdv, maxval=stdv)
    return weight, b


if __name__ == "__main__":
    # Small synthetic problem: N=64 nodes, in_features=16, out_features=32.
    N, F_IN, F_OUT = 64, 16, 32

    key = jax.random.PRNGKey(0)
    k_params, k_x, k_adj = jax.random.split(key, 3)

    weight, bias = init_gcn_params(k_params, F_IN, F_OUT, bias=True)
    x = jax.random.normal(k_x, (N, F_IN), jnp.float32)

    # Dense "sparse" adjacency: random mask, self-loops, row-normalized.
    adj_raw = (jax.random.uniform(k_adj, (N, N)) < 0.1).astype(jnp.float32)
    adj_raw = adj_raw + jnp.eye(N, dtype=jnp.float32)
    adj = adj_raw / jnp.sum(adj_raw, axis=1, keepdims=True)

    ref = adj @ (x @ weight) + bias[None, :]

    # f32 path: exact-ish validation against the plain-JAX reference.
    out_f32 = graph_convolution(x, adj, weight, bias, compute_dtype=jnp.float32)
    out_f32 = jax.block_until_ready(out_f32)
    assert out_f32.shape == (N, F_OUT)
    assert jnp.allclose(out_f32, ref, atol=1e-5, rtol=1e-5), "f32 mismatch vs reference"

    # bf16 path (default; halves adjacency HBM traffic): looser tolerance.
    out_bf16 = graph_convolution(x, adj, weight, bias)
    out_bf16 = jax.block_until_ready(out_bf16)
    assert jnp.allclose(out_bf16, ref, atol=3e-2, rtol=3e-2), "bf16 mismatch vs reference"

    # No-bias path.
    out_nb = graph_convolution(x, adj, weight, None, compute_dtype=jnp.float32)
    out_nb = jax.block_until_ready(out_nb)
    assert jnp.allclose(out_nb, adj @ (x @ weight), atol=1e-5, rtol=1e-5), "no-bias mismatch"

    print("KERNEL_OK")
</pallas_src>

<mosaic_0001>
module attributes {stable_mosaic.version = 11 : i64} {
  func.func @_support_kernel(%arg0: i32, %arg1: memref<128x16xf32, #tpu.memory_space<vmem>>, %arg2: memref<16x128xf32, #tpu.memory_space<vmem>>, %arg3: memref<128x128xf32, #tpu.memory_space<vmem>>) attributes {dimension_semantics = [#tpu.dimension_semantics<parallel>], iteration_bounds = array<i64: 1>, scalar_prefetch = 0 : i64, scratch_operands = 0 : i64, tpu.core_type = #tpu.core_type<tc>, window_params = [{transform_indices = @transform_0, window_bounds = array<i64: 128, 16>}, {pipeline_mode = #tpu.pipeline_mode<synchronous>, transform_indices = @transform_1, window_bounds = array<i64: 16, 128>}, {transform_indices = @transform_2, window_bounds = array<i64: 128, 128>}]} {
    %c0 = arith.constant 0 : index
    %c0_0 = arith.constant 0 : index
    %0 = vector.load %arg1[%c0, %c0_0] : memref<128x16xf32, #tpu.memory_space<vmem>>, vector<128x16xf32>
    %c0_1 = arith.constant 0 : index
    %c0_2 = arith.constant 0 : index
    %1 = vector.load %arg2[%c0_1, %c0_2] : memref<16x128xf32, #tpu.memory_space<vmem>>, vector<16x128xf32>
    %cst = arith.constant dense<0.000000e+00> : vector<128x128xf32>
    %2 = tpu.matmul %0, %1, %cst {dimension_numbers = #tpu.dot_dimension_numbers<[1], [0], [0], [1], [0, 0, 1, 1], [], []>} : vector<128x16xf32>, vector<16x128xf32>, vector<128x128xf32> -> vector<128x128xf32>
    %c0_3 = arith.constant 0 : index
    %c0_4 = arith.constant 0 : index
    %3 = vector.load %arg3[%c0_3, %c0_4] : memref<128x128xf32, #tpu.memory_space<vmem>>, vector<128x128xf32>
    tpu.vector_store %arg3[%c0_3, %c0_4], %2 {strides = array<i32>} : memref<128x128xf32, #tpu.memory_space<vmem>>, vector<128x128xf32>,
    return
  }
  func.func @transform_0(%arg0: i32) -> (i32, i32) {
    %c0_i32 = arith.constant 0 : i32
    %c0_i32_0 = arith.constant 0 : i32
    return %arg0, %c0_i32 : i32, i32
  }
  func.func @transform_1(%arg0: i32) -> (i32, i32) {
    %c0_i32 = arith.constant 0 : i32
    %c0_i32_0 = arith.constant 0 : i32
    %c0_i32_1 = arith.constant 0 : i32
    return %c0_i32, %c0_i32_0 : i32, i32
  }
  func.func @transform_2(%arg0: i32) -> (i32, i32) {
    %c0_i32 = arith.constant 0 : i32
    %c0_i32_0 = arith.constant 0 : i32
    return %arg0, %c0_i32 : i32, i32
  }
}

module attributes {stable_mosaic.version = 11 : i64} {
  func.func @_aggregate_kernel(%arg0: i32, %arg1: i32, %arg2: memref<64x128xf32, #tpu.memory_space<vmem>>, %arg3: memref<128x128xf32, #tpu.memory_space<vmem>>, %arg4: memref<1x128xf32, #tpu.memory_space<vmem>>, %arg5: memref<64x128xf32, #tpu.memory_space<vmem>>, %arg6: memref<64x128xf32, #tpu.memory_space<vmem>>) attributes {dimension_semantics = [#tpu.dimension_semantics<parallel>, #tpu.dimension_semantics<arbitrary>], iteration_bounds = array<i64: 1, 1>, scalar_prefetch = 0 : i64, scratch_operands = 1 : i64, tpu.core_type = #tpu.core_type<tc>, window_params = [{transform_indices = @transform_0, window_bounds = array<i64: 64, 128>}, {transform_indices = @transform_1, window_bounds = array<i64: 128, 128>}, {pipeline_mode = #tpu.pipeline_mode<synchronous>, transform_indices = @transform_2, window_bounds = array<i64: 1, 128>}, {transform_indices = @transform_3, window_bounds = array<i64: 64, 128>}]} {
    %c0_i32 = arith.constant 0 : i32
    %0 = arith.cmpi eq, %arg1, %c0_i32 : i32
    %1 = arith.extui %0 : i1 to i32
    %c0_i32_0 = arith.constant 0 : i32
    %2 = arith.cmpi ne, %1, %c0_i32_0 : i32
    scf.if %2 {
      %cst_10 = arith.constant 0.000000e+00 : f32
      %12 = vector.broadcast %cst_10 : f32 to vector<64x128xf32>
      %c0_11 = arith.constant 0 : index
      %c0_12 = arith.constant 0 : index
      %13 = vector.load %arg6[%c0_11, %c0_12] : memref<64x128xf32, #tpu.memory_space<vmem>>, vector<64x128xf32>
      tpu.vector_store %arg6[%c0_11, %c0_12], %12 {strides = array<i32>} : memref<64x128xf32, #tpu.memory_space<vmem>>, vector<64x128xf32>,
    } else {
    }
    %c0 = arith.constant 0 : index
    %c0_1 = arith.constant 0 : index
    %3 = vector.load %arg6[%c0, %c0_1] : memref<64x128xf32, #tpu.memory_space<vmem>>, vector<64x128xf32>
    %c0_2 = arith.constant 0 : index
    %c0_3 = arith.constant 0 : index
    %4 = vector.load %arg2[%c0_2, %c0_3] : memref<64x128xf32, #tpu.memory_space<vmem>>, vector<64x128xf32>
    %c0_4 = arith.constant 0 : index
    %c0_5 = arith.constant 0 : index
    %5 = vector.load %arg3[%c0_4, %c0_5] : memref<128x128xf32, #tpu.memory_space<vmem>>, vector<128x128xf32>
    %cst = arith.constant dense<0.000000e+00> : vector<64x128xf32>
    %6 = tpu.matmul %4, %5, %cst {dimension_numbers = #tpu.dot_dimension_numbers<[1], [0], [0], [1], [0, 0, 1, 1], [], []>} : vector<64x128xf32>, vector<128x128xf32>, vector<64x128xf32> -> vector<64x128xf32>
    %7 = arith.addf %3, %6 : vector<64x128xf32>
    %c0_6 = arith.constant 0 : index
    %c0_7 = arith.constant 0 : index
    %8 = vector.load %arg6[%c0_6, %c0_7] : memref<64x128xf32, #tpu.memory_space<vmem>>, vector<64x128xf32>
    tpu.vector_store %arg6[%c0_6, %c0_7], %7 {strides = array<i32>} : memref<64x128xf32, #tpu.memory_space<vmem>>, vector<64x128xf32>,
    %c0_i32_8 = arith.constant 0 : i32
    %9 = arith.cmpi eq, %arg1, %c0_i32_8 : i32
    %10 = arith.extui %9 : i1 to i32
    %c0_i32_9 = arith.constant 0 : i32
    %11 = arith.cmpi ne, %10, %c0_i32_9 : i32
    scf.if %11 {
      %c0_10 = arith.constant 0 : index
      %c0_11 = arith.constant 0 : index
      %12 = vector.load %arg6[%c0_10, %c0_11] : memref<64x128xf32, #tpu.memory_space<vmem>>, vector<64x128xf32>
      %c0_12 = arith.constant 0 : index
      %c0_13 = arith.constant 0 : index
      %13 = vector.load %arg4[%c0_12, %c0_13] : memref<1x128xf32, #tpu.memory_space<vmem>>, vector<1x128xf32>
      %14 = vector.broadcast %13 : vector<1x128xf32> to vector<64x128xf32>
      %15 = arith.addf %12, %14 : vector<64x128xf32>
      %c0_14 = arith.constant 0 : index
      %c0_15 = arith.constant 0 : index
      %16 = vector.load %arg5[%c0_14, %c0_15] : memref<64x128xf32, #tpu.memory_space<vmem>>, vector<64x128xf32>
      tpu.vector_store %arg5[%c0_14, %c0_15], %15 {strides = array<i32>} : memref<64x128xf32, #tpu.memory_space<vmem>>, vector<64x128xf32>,
    } else {
    }
    return
  }
  func.func @transform_0(%arg0: i32, %arg1: i32) -> (i32, i32) {
    %c0_i32 = arith.constant 0 : i32
    return %arg0, %arg1 : i32, i32
  }
  func.func @transform_1(%arg0: i32, %arg1: i32) -> (i32, i32) {
    %c0_i32 = arith.constant 0 : i32
    %c0_i32_0 = arith.constant 0 : i32
    return %arg1, %c0_i32 : i32, i32
  }
  func.func @transform_2(%arg0: i32, %arg1: i32) -> (i32, i32) {
    %c0_i32 = arith.constant 0 : i32
    %c0_i32_0 = arith.constant 0 : i32
    %c0_i32_1 = arith.constant 0 : i32
    return %c0_i32, %c0_i32_0 : i32, i32
  }
  func.func @transform_3(%arg0: i32, %arg1: i32) -> (i32, i32) {
    %c0_i32 = arith.constant 0 : i32
    %c0_i32_0 = arith.constant 0 : i32
    return %arg0, %c0_i32 : i32, i32
  }
}

</mosaic_0001>

<llo_original>
// kernel: graph_convolution.2
$region0: #{graph_convolution.2}
  #allocation0 [shape = 'u32[]', space=smem, size = 0x4, offset = 0x4, fixed_abs, tag = 'smem constant byte address 0x4 - core index']
  #allocation1 [shape = 'u32[72,128]{1,0:T(1,128)}', space=vmem, size = 0x9000, scoped, tag = 'internal scratch']
  %s0 = inlined_call_operand.vmem [shape: f32[128,16], index: 0, kind: input, shape index: {}]
  %s1 = inlined_call_operand.vmem [shape: f32[16,128], index: 1, kind: input, shape index: {}]
  %s2 = inlined_call_operand.vmem [shape: f32[128,128], index: 2, kind: output, shape index: {}]
  %s3 = sld [smem:[#allocation0]]
  $region18: #{graph_convolution.2} parent=0
    _
  %s5 = ssub.s32 1, %s3
  %s6 = scalar_select 0, %s5, %s3
  // Predicated region
  $region2: #{graph_convolution.2} parent=0 // pred_check
    _
  $region3: #{graph_convolution.2} parent=0 // pred_check_branch
    %8 = sbr.rel (0) target = $region5
  $region4: #{graph_convolution.2} parent=0 // pred_region
    _
  $region5: #{graph_convolution.2} parent=0 // pred_fallthru
    _
  // Predicated region
  $region6: #{graph_convolution.2} parent=0 // pred_check
    _
  $region7: #{graph_convolution.2} parent=0 // pred_check_branch
    %10 = sbr.rel (0) target = $region9
  $region8: #{graph_convolution.2} parent=0 // pred_region
    _
  $region9: #{graph_convolution.2} parent=0 // pred_fallthru
    _
  %v11 = vld [vmem:[%s0] sm:$0xff]
  %v12 = vld [vmem:[%s0 + $0x8] sm:$0xff]
  %v13 = vld [vmem:[%s0 + $0x10] sm:$0xff]
  %v14 = vld [vmem:[%s0 + $0x18] sm:$0xff]
  %v15 = vld [vmem:[%s0 + $0x20] sm:$0xff]
  %v16 = vld [vmem:[%s0 + $0x28] sm:$0xff]
  %v17 = vld [vmem:[%s0 + $0x30] sm:$0xff]
  %v18 = vld [vmem:[%s0 + $0x38] sm:$0xff]
  %v19 = vld [vmem:[%s0 + $0x40] sm:$0xff]
  %v20 = vld [vmem:[%s0 + $0x48] sm:$0xff]
  %v21 = vld [vmem:[%s0 + $0x50] sm:$0xff]
  %v22 = vld [vmem:[%s0 + $0x58] sm:$0xff]
  %v23 = vld [vmem:[%s0 + $0x60] sm:$0xff]
  %v24 = vld [vmem:[%s0 + $0x68] sm:$0xff]
  %v25 = vld [vmem:[%s0 + $0x70] sm:$0xff]
  %v26 = vld [vmem:[%s0 + $0x78] sm:$0xff]
  %v27 = vld [vmem:[%s1] sm:$0xff]
  %v28 = vld [vmem:[%s1 + $0x8] sm:$0xff]
  %vm29 = vcmask 130048
  %v31 = vsel %vm29, %v11, 0
  %v34 = vsel %vm29, %v12, 0
  %v37 = vsel %vm29, %v13, 0
  %v40 = vsel %vm29, %v14, 0
  %v43 = vsel %vm29, %v15, 0
  %v46 = vsel %vm29, %v16, 0
  %v49 = vsel %vm29, %v17, 0
  %v52 = vsel %vm29, %v18, 0
  %v55 = vsel %vm29, %v19, 0
  %v58 = vsel %vm29, %v20, 0
  %v61 = vsel %vm29, %v21, 0
  %v64 = vsel %vm29, %v22, 0
  %v67 = vsel %vm29, %v23, 0
  %v70 = vsel %vm29, %v24, 0
  %v73 = vsel %vm29, %v25, 0
  %v76 = vsel %vm29, %v26, 0
  %78 = vmatpush.msra.mxu0 0.0
  %79 = vmatpush.msra.mxu0 0.0
  %80 = vmatpush.msra.mxu0 0.0
  %81 = vmatpush.msra.mxu0 0.0
  %82 = vmatpush.msra.mxu0 0.0
  %83 = vmatpush.msra.mxu0 0.0
  %84 = vmatpush.msra.mxu0 0.0
  %85 = vmatpush.msra.mxu0 0.0
  %86 = vmatpush.msra.mxu0 0.0
  %87 = vmatpush.msra.mxu0 0.0
  %88 = vmatpush.msra.mxu0 0.0
  %89 = vmatpush.msra.mxu0 0.0
  %90 = vmatpush.msra.mxu0 0.0
  %91 = vmatpush.msra.mxu0 0.0
  %92 = vmatpush.msra.mxu0 %v28
  %93 = vmatpush.msra.mxu0 %v27
  %94 = vmatmul.f32.gmra.mxu0 %v31
  %v95 = vpop.f32.mrf.mxu0
  %v96 = vadd.f32 0.0, %v95
  %97 = vmatmul.f32.gmra.mxu0 %v34
  %v98 = vpop.f32.mrf.mxu0
  %v99 = vadd.f32 0.0, %v98
  %100 = vmatmul.f32.gmra.mxu0 %v37
  %v101 = vpop.f32.mrf.mxu0
  %v102 = vadd.f32 0.0, %v101
  %103 = vmatmul.f32.gmra.mxu0 %v40
  %v104 = vpop.f32.mrf.mxu0
  %v105 = vadd.f32 0.0, %v104
  %106 = vmatmul.f32.gmra.mxu0 %v43
  %v107 = vpop.f32.mrf.mxu0
  %v108 = vadd.f32 0.0, %v107
  %109 = vmatmul.f32.gmra.mxu0 %v46
  %v110 = vpop.f32.mrf.mxu0
  %v111 = vadd.f32 0.0, %v110
  %112 = vmatmul.f32.gmra.mxu0 %v49
  %v113 = vpop.f32.mrf.mxu0
  %v114 = vadd.f32 0.0, %v113
  %115 = vmatmul.f32.gmra.mxu0 %v52
  %v116 = vpop.f32.mrf.mxu0
  %v117 = vadd.f32 0.0, %v116
  %118 = vmatmul.f32.gmra.mxu0 %v55
  %v119 = vpop.f32.mrf.mxu0
  %v120 = vadd.f32 0.0, %v119
  %121 = vmatmul.f32.gmra.mxu0 %v58
  %v122 = vpop.f32.mrf.mxu0
  %v123 = vadd.f32 0.0, %v122
  %124 = vmatmul.f32.gmra.mxu0 %v61
  %v125 = vpop.f32.mrf.mxu0
  %v126 = vadd.f32 0.0, %v125
  %127 = vmatmul.f32.gmra.mxu0 %v64
  %v128 = vpop.f32.mrf.mxu0
  %v129 = vadd.f32 0.0, %v128
  %130 = vmatmul.f32.gmra.mxu0 %v67
  %v131 = vpop.f32.mrf.mxu0
  %v132 = vadd.f32 0.0, %v131
  %133 = vmatmul.f32.gmra.mxu0 %v70
  %v134 = vpop.f32.mrf.mxu0
  %v135 = vadd.f32 0.0, %v134
  %136 = vmatmul.f32.gmra.mxu0 %v73
  %v137 = vpop.f32.mrf.mxu0
  %v138 = vadd.f32 0.0, %v137
  %139 = vmatmul.f32.gmra.mxu0 %v76
  %v140 = vpop.f32.mrf.mxu0
  %v141 = vadd.f32 0.0, %v140
  %142 = vdwg.mxu0
  %143 = vst [vmem:[%s2] sm:$0xff] %v96
  %144 = vst [vmem:[%s2 + $0x8] sm:$0xff] %v99
  %145 = vst [vmem:[%s2 + $0x10] sm:$0xff] %v102
  %146 = vst [vmem:[%s2 + $0x18] sm:$0xff] %v105
  %147 = vst [vmem:[%s2 + $0x20] sm:$0xff] %v108
  %148 = vst [vmem:[%s2 + $0x28] sm:$0xff] %v111
  %149 = vst [vmem:[%s2 + $0x30] sm:$0xff] %v114
  %150 = vst [vmem:[%s2 + $0x38] sm:$0xff] %v117
  %151 = vst [vmem:[%s2 + $0x40] sm:$0xff] %v120
  %152 = vst [vmem:[%s2 + $0x48] sm:$0xff] %v123
  %153 = vst [vmem:[%s2 + $0x50] sm:$0xff] %v126
  %154 = vst [vmem:[%s2 + $0x58] sm:$0xff] %v129
  %155 = vst [vmem:[%s2 + $0x60] sm:$0xff] %v132
  %156 = vst [vmem:[%s2 + $0x68] sm:$0xff] %v135
  %157 = vst [vmem:[%s2 + $0x70] sm:$0xff] %v138
  %158 = vst [vmem:[%s2 + $0x78] sm:$0xff] %v141
  // Predicated region
  $region10: #{graph_convolution.2} parent=0 // pred_check
    _
  $region11: #{graph_convolution.2} parent=0 // pred_check_branch
    %160 = sbr.rel (0) target = $region13
  $region12: #{graph_convolution.2} parent=0 // pred_region
    _
  $region13: #{graph_convolution.2} parent=0 // pred_fallthru
    _
  // Predicated region
  $region14: #{graph_convolution.2} parent=0 // pred_check
    _
  $region15: #{graph_convolution.2} parent=0 // pred_check_branch
    %162 = sbr.rel (0) target = $region17
  $region16: #{graph_convolution.2} parent=0 // pred_region
    _
  $region17: #{graph_convolution.2} parent=0 // pred_fallthru
    _

// kernel: graph_convolution.3
$region0: #{graph_convolution.3}
  #allocation0 [shape = 'u32[]', space=smem, size = 0x4, offset = 0x4, fixed_abs, tag = 'smem constant byte address 0x4 - core index']
  #allocation1 [shape = 'u32[72,128]{1,0:T(1,128)}', space=vmem, size = 0x9000, scoped, tag = 'internal scratch']
  #allocation2 [shape = 'f32[64,128]{1,0:T(8,128)}', space=vmem, size = 0x8000, scoped, tag = 'scratch operand']
  %s0 = inlined_call_operand.vmem [shape: f32[64,128], index: 0, kind: input, shape index: {}]
  %s1 = inlined_call_operand.vmem [shape: f32[128,128], index: 1, kind: input, shape index: {}]
  %s2 = inlined_call_operand.vmem [shape: f32[1,128], index: 2, kind: input, shape index: {}]
  %s3 = inlined_call_operand.vmem [shape: f32[64,128], index: 3, kind: output, shape index: {}]
  %s4 = sld [smem:[#allocation0]]
  $region30: #{graph_convolution.3} parent=0
    _
  %s6 = ssub.s32 1, %s4
  %s7 = scalar_select 0, %s6, %s4
  // Predicated region
  $region2: #{graph_convolution.3} parent=0 // pred_check
    _
  $region3: #{graph_convolution.3} parent=0 // pred_check_branch
    %9 = sbr.rel (0) target = $region5
  $region4: #{graph_convolution.3} parent=0 // pred_region
    _
  $region5: #{graph_convolution.3} parent=0 // pred_fallthru
    _
  // Predicated region
  $region6: #{graph_convolution.3} parent=0 // pred_check
    _
  $region7: #{graph_convolution.3} parent=0 // pred_check_branch
    %11 = sbr.rel (0) target = $region9
  $region8: #{graph_convolution.3} parent=0 // pred_region
    _
  $region9: #{graph_convolution.3} parent=0 // pred_fallthru
    _
  // Predicated region
  $region10: #{graph_convolution.3} parent=0 // pred_check
    _
  $region11: #{graph_convolution.3} parent=0 // pred_check_branch
    %13 = sbr.rel (0) target = $region13
  $region12: #{graph_convolution.3} parent=0 // pred_region
    _
  $region13: #{graph_convolution.3} parent=0 // pred_fallthru
    _
  %p14 = scmp.eq.s32.totalorder 0, 0
  // Predicated region
  $region14: #{graph_convolution.3} parent=0 // pred_check
    %p15 = pneg %p14
  $region15: #{graph_convolution.3} parent=0 // pred_check_branch
    %17 = sbr.rel (%p15) target = $region17
  $region16: #{graph_convolution.3} parent=0 // pred_region
    %18 = vst [vmem:[#allocation2] sm:$0xff] 0.0
    %19 = vst [vmem:[#allocation2 + $0x8] sm:$0xff] 0.0
    %20 = vst [vmem:[#allocation2 + $0x10] sm:$0xff] 0.0
    %21 = vst [vmem:[#allocation2 + $0x18] sm:$0xff] 0.0
    %22 = vst [vmem:[#allocation2 + $0x20] sm:$0xff] 0.0
    %23 = vst [vmem:[#allocation2 + $0x28] sm:$0xff] 0.0
    %24 = vst [vmem:[#allocation2 + $0x30] sm:$0xff] 0.0
    %25 = vst [vmem:[#allocation2 + $0x38] sm:$0xff] 0.0
  $region17: #{graph_convolution.3} parent=0 // pred_fallthru
    _
  %v26 = vld [vmem:[#allocation2] sm:$0xff]
  %v27 = vld [vmem:[#allocation2 + $0x8] sm:$0xff]
  %v28 = vld [vmem:[#allocation2 + $0x10] sm:$0xff]
  %v29 = vld [vmem:[#allocation2 + $0x18] sm:$0xff]
  %v30 = vld [vmem:[#allocation2 + $0x20] sm:$0xff]
  %v31 = vld [vmem:[#allocation2 + $0x28] sm:$0xff]
  %v32 = vld [vmem:[#allocation2 + $0x30] sm:$0xff]
  %v33 = vld [vmem:[#allocation2 + $0x38] sm:$0xff]
  %v34 = vld [vmem:[%s0] sm:$0xff]
  %v35 = vld [vmem:[%s0 + $0x8] sm:$0xff]
  %v36 = vld [vmem:[%s0 + $0x10] sm:$0xff]
  %v37 = vld [vmem:[%s0 + $0x18] sm:$0xff]
  %v38 = vld [vmem:[%s0 + $0x20] sm:$0xff]
  %v39 = vld [vmem:[%s0 + $0x28] sm:$0xff]
  %v40 = vld [vmem:[%s0 + $0x30] sm:$0xff]
  %v41 = vld [vmem:[%s0 + $0x38] sm:$0xff]
  %v42 = vld [vmem:[%s1] sm:$0xff]
  %v43 = vld [vmem:[%s1 + $0x8] sm:$0xff]
  %v44 = vld [vmem:[%s1 + $0x10] sm:$0xff]
  %v45 = vld [vmem:[%s1 + $0x18] sm:$0xff]
  %v46 = vld [vmem:[%s1 + $0x20] sm:$0xff]
  %v47 = vld [vmem:[%s1 + $0x28] sm:$0xff]
  %v48 = vld [vmem:[%s1 + $0x30] sm:$0xff]
  %v49 = vld [vmem:[%s1 + $0x38] sm:$0xff]
  %v50 = vld [vmem:[%s1 + $0x40] sm:$0xff]
  %v51 = vld [vmem:[%s1 + $0x48] sm:$0xff]
  %v52 = vld [vmem:[%s1 + $0x50] sm:$0xff]
  %v53 = vld [vmem:[%s1 + $0x58] sm:$0xff]
  %v54 = vld [vmem:[%s1 + $0x60] sm:$0xff]
  %v55 = vld [vmem:[%s1 + $0x68] sm:$0xff]
  %v56 = vld [vmem:[%s1 + $0x70] sm:$0xff]
  %v57 = vld [vmem:[%s1 + $0x78] sm:$0xff]
  %58 = vmatpush.msra.mxu0 %v57
  %59 = vmatpush.msra.mxu0 %v56
  %60 = vmatpush.msra.mxu0 %v55
  %61 = vmatpush.msra.mxu0 %v54
  %62 = vmatpush.msra.mxu0 %v53
  %63 = vmatpush.msra.mxu0 %v52
  %64 = vmatpush.msra.mxu0 %v51
  %65 = vmatpush.msra.mxu0 %v50
  %66 = vmatpush.msra.mxu0 %v49
  %67 = vmatpush.msra.mxu0 %v48
  %68 = vmatpush.msra.mxu0 %v47
  %69 = vmatpush.msra.mxu0 %v46
  %70 = vmatpush.msra.mxu0 %v45
  %71 = vmatpush.msra.mxu0 %v44
  %72 = vmatpush.msra.mxu0 %v43
  %73 = vmatpush.msra.mxu0 %v42
  %74 = vmatmul.f32.gmra.mxu0 %v34
  %v75 = vpop.f32.mrf.mxu0
  %v76 = vadd.f32 0.0, %v75
  %77 = vmatmul.f32.gmra.mxu0 %v35
  %v78 = vpop.f32.mrf.mxu0
  %v79 = vadd.f32 0.0, %v78
  %80 = vmatmul.f32.gmra.mxu0 %v36
  %v81 = vpop.f32.mrf.mxu0
  %v82 = vadd.f32 0.0, %v81
  %83 = vmatmul.f32.gmra.mxu0 %v37
  %v84 = vpop.f32.mrf.mxu0
  %v85 = vadd.f32 0.0, %v84
  %86 = vmatmul.f32.gmra.mxu0 %v38
  %v87 = vpop.f32.mrf.mxu0
  %v88 = vadd.f32 0.0, %v87
  %89 = vmatmul.f32.gmra.mxu0 %v39
  %v90 = vpop.f32.mrf.mxu0
  %v91 = vadd.f32 0.0, %v90
  %92 = vmatmul.f32.gmra.mxu0 %v40
  %v93 = vpop.f32.mrf.mxu0
  %v94 = vadd.f32 0.0, %v93
  %95 = vmatmul.f32.gmra.mxu0 %v41
  %v96 = vpop.f32.mrf.mxu0
  %v97 = vadd.f32 0.0, %v96
  %98 = vdwg.mxu0
  %v99 = vadd.f32 %v26, %v76
  %v100 = vadd.f32 %v27, %v79
  %v101 = vadd.f32 %v28, %v82
  %v102 = vadd.f32 %v29, %v85
  %v103 = vadd.f32 %v30, %v88
  %v104 = vadd.f32 %v31, %v91
  %v105 = vadd.f32 %v32, %v94
  %v106 = vadd.f32 %v33, %v97
  %107 = vst [vmem:[#allocation2] sm:$0xff] %v99
  %108 = vst [vmem:[#allocation2 + $0x8] sm:$0xff] %v100
  %109 = vst [vmem:[#allocation2 + $0x10] sm:$0xff] %v101
  %110 = vst [vmem:[#allocation2 + $0x18] sm:$0xff] %v102
  %111 = vst [vmem:[#allocation2 + $0x20] sm:$0xff] %v103
  %112 = vst [vmem:[#allocation2 + $0x28] sm:$0xff] %v104
  %113 = vst [vmem:[#allocation2 + $0x30] sm:$0xff] %v105
  %114 = vst [vmem:[#allocation2 + $0x38] sm:$0xff] %v106
  // Predicated region
  $region18: #{graph_convolution.3} parent=0 // pred_check
    %p115 = pneg %p14
  $region19: #{graph_convolution.3} parent=0 // pred_check_branch
    %117 = sbr.rel (%p115) target = $region21
  $region20: #{graph_convolution.3} parent=0 // pred_region
    %v118 = vld [vmem:[#allocation2] sm:$0xff]
    %v119 = vld [vmem:[#allocation2 + $0x8] sm:$0xff]
    %v120 = vld [vmem:[#allocation2 + $0x10] sm:$0xff]
    %v121 = vld [vmem:[#allocation2 + $0x18] sm:$0xff]
    %v122 = vld [vmem:[#allocation2 + $0x20] sm:$0xff]
    %v123 = vld [vmem:[#allocation2 + $0x28] sm:$0xff]
    %v124 = vld [vmem:[#allocation2 + $0x30] sm:$0xff]
    %v125 = vld [vmem:[#allocation2 + $0x38] sm:$0xff]
    %v126 = vld [vmem:[%s2] sm:$0x1]
    %v128 = vperm.slane %v126, 0
    %v130 = vadd.f32 %v118, %v128
    %v131 = vadd.f32 %v119, %v128
    %v132 = vadd.f32 %v120, %v128
    %v133 = vadd.f32 %v121, %v128
    %v134 = vadd.f32 %v122, %v128
    %v135 = vadd.f32 %v123, %v128
    %v136 = vadd.f32 %v124, %v128
    %v137 = vadd.f32 %v125, %v128
    %138 = vst [vmem:[%s3] sm:$0xff] %v130
    %139 = vst [vmem:[%s3 + $0x8] sm:$0xff] %v131
    %140 = vst [vmem:[%s3 + $0x10] sm:$0xff] %v132
    %141 = vst [vmem:[%s3 + $0x18] sm:$0xff] %v133
    %142 = vst [vmem:[%s3 + $0x20] sm:$0xff] %v134
    %143 = vst [vmem:[%s3 + $0x28] sm:$0xff] %v135
    %144 = vst [vmem:[%s3 + $0x30] sm:$0xff] %v136
    %145 = vst [vmem:[%s3 + $0x38] sm:$0xff] %v137
  $region21: #{graph_convolution.3} parent=0 // pred_fallthru
    _
  // Predicated region
  $region22: #{graph_convolution.3} parent=0 // pred_check
    _
  $region23: #{graph_convolution.3} parent=0 // pred_check_branch
    %147 = sbr.rel (0) target = $region25
  $region24: #{graph_convolution.3} parent=0 // pred_region
    _
  $region25: #{graph_convolution.3} parent=0 // pred_fallthru
    _
  // Predicated region
  $region26: #{graph_convolution.3} parent=0 // pred_check
    _
  $region27: #{graph_convolution.3} parent=0 // pred_check_branch
    %149 = sbr.rel (0) target = $region29
  $region28: #{graph_convolution.3} parent=0 // pred_region
    _
  $region29: #{graph_convolution.3} parent=0 // pred_fallthru
    _

</llo_original>
